<compile_context>
chip_gen: v7x
topology: tpu7x:2x2x1
jax: 0.10.0
libtpu: 0.0.40
codegen_flags: <defaults>
</compile_context>

<pallas_src>
import functools
import math

import jax
import jax.numpy as jnp
from jax import lax
from jax.experimental import pallas as pl
from jax.experimental.pallas import tpu as pltpu

_NEG = -1.0e30  # "minus infinity" for masked (padded) class columns


def _round_up(x, m):
    return ((x + m - 1) // m) * m


def _ndevice_top_kernel(x_ref, w_ref, winv_ref, lab_ref, out_ref,
                        nfeat_ref, m_ref, l_ref, xg_ref,
                        *, num_classes, block_c):
    ci = pl.program_id(1)
    nc = pl.num_programs(1)

    @pl.when(ci == 0)
    def _init():
        # Row-wise L2 normalization of features (torch.norm(..., dim=1).clamp(min=1e-12)).
        # rsqrt on the clamped sum-of-squares == 1 / clamp(norm, 1e-12); goes to the EUP.
        x = x_ref[...].astype(jnp.float32)                           # (TB, F)
        ss = jnp.sum(x * x, axis=1, keepdims=True)                   # (TB, 1)
        inv = lax.rsqrt(jnp.maximum(ss, 1e-24))
        nfeat_ref[...] = (x * inv).astype(nfeat_ref.dtype)           # cached for all C tiles
        m_ref[...] = jnp.full(m_ref.shape, _NEG, m_ref.dtype)
        l_ref[...] = jnp.zeros(l_ref.shape, l_ref.dtype)
        xg_ref[...] = jnp.zeros(xg_ref.shape, xg_ref.dtype)

    # Raw W tile on the MXU; rescale by 1/||w_col|| afterwards (only TB x TC elements),
    # so normed_w = W / ||W|| is never materialized.
    cos = jnp.dot(nfeat_ref[...], w_ref[...], preferred_element_type=jnp.float32)
    cos = cos * winv_ref[...]                                        # (1, TC) broadcast
    cos = jnp.clip(cos, -1.0, 1.0)
    # TODO(synk): get_probs_i is `pass` in the reference module; use identity (probs = cosine).

    # Mask padded class columns (beyond the true num_classes) out of the logsumexp.
    col = ci * block_c + lax.broadcasted_iota(jnp.int32, cos.shape, 1)
    probs = jnp.where(col < num_classes, cos, _NEG)

    # Online logsumexp over the streamed class axis.
    m_old = m_ref[...]
    m_new = jnp.maximum(m_old, jnp.max(probs, axis=1, keepdims=True))
    l_ref[...] = (jnp.exp(m_old - m_new) * l_ref[...]
                  + jnp.sum(jnp.exp(probs - m_new), axis=1, keepdims=True))
    m_ref[...] = m_new

    # Gathered logit probs[b, label[b]] for labels that live in this class tile.
    lab = lab_ref[...]                                               # (TB, 1) int32
    xg_ref[...] += jnp.sum(jnp.where(col == lab, cos, 0.0), axis=1, keepdims=True)

    @pl.when(ci == nc - 1)
    def _finalize():
        # per-row loss contribution: logsumexp - gathered logit
        out_ref[...] = m_ref[...] + jnp.log(l_ref[...]) - xg_ref[...]


def ndevice_top_loss(x, w, label, *, block_b=128, block_c=512, mxu_dtype=jnp.bfloat16):
    """x: (B, F) f32, w: (F, C) f32, label: (B,) int -> scalar loss (f32)."""
    B, F = x.shape
    F2, C = w.shape
    assert F == F2, (F, F2)

    x32 = x.astype(jnp.float32)
    w32 = w.astype(jnp.float32)

    # Lane/sublane-friendly tile sizes and padded extents.
    tb = min(block_b, _round_up(B, 8))
    tc = min(block_c, _round_up(C, 128))
    b_pad = _round_up(B, tb)
    c_pad = _round_up(C, tc)
    f_pad = _round_up(F, 8)

    # Per-column 1/||w|| (== 1/clamp(norm, 1e-12)); tiny (1, C) precompute so the
    # kernel never materializes a normalized copy of W.
    col_ss = jnp.sum(w32 * w32, axis=0, keepdims=True)               # (1, C)
    winv = lax.rsqrt(jnp.maximum(col_ss, 1e-24))

    x_p = jnp.zeros((b_pad, f_pad), jnp.float32).at[:B, :F].set(x32)
    w_p = jnp.zeros((f_pad, c_pad), mxu_dtype).at[:F, :C].set(w32.astype(mxu_dtype))
    winv_p = jnp.zeros((1, c_pad), jnp.float32).at[:, :C].set(winv)
    lab_p = jnp.full((b_pad, 1), -1, jnp.int32).at[:B, 0].set(label.astype(jnp.int32))

    nb, nc = b_pad // tb, c_pad // tc
    kernel = functools.partial(_ndevice_top_kernel, num_classes=C, block_c=tc)

    w_itemsize = jnp.dtype(mxu_dtype).itemsize
    cost = pl.CostEstimate(
        flops=2 * b_pad * f_pad * c_pad + 8 * b_pad * c_pad,
        transcendentals=b_pad * c_pad + 4 * b_pad,
        bytes_accessed=(nb * f_pad * c_pad * w_itemsize      # W re-streamed per B tile
                        + b_pad * f_pad * 4                  # x
                        + nb * c_pad * 4                     # 1/||w||
                        + b_pad * 4 + b_pad * 4),            # labels + per-row output
    )

    per_row = pl.pallas_call(
        kernel,
        out_shape=jax.ShapeDtypeStruct((b_pad, 1), jnp.float32),
        grid_spec=pltpu.PrefetchScalarGridSpec(
            num_scalar_prefetch=0,
            grid=(nb, nc),                                    # C axis last (reduction)
            in_specs=[
                pl.BlockSpec((tb, f_pad), lambda bi, ci: (bi, 0)),   # x tile (f32)
                pl.BlockSpec((f_pad, tc), lambda bi, ci: (0, ci)),   # streamed W tile (bf16)
                pl.BlockSpec((1, tc), lambda bi, ci: (0, ci)),       # 1/||w_col|| tile
                pl.BlockSpec((tb, 1), lambda bi, ci: (bi, 0)),       # labels
            ],
            out_specs=pl.BlockSpec((tb, 1), lambda bi, ci: (bi, 0)),
            scratch_shapes=[
                pltpu.VMEM((tb, f_pad), mxu_dtype),   # cached normalized features
                pltpu.VMEM((tb, 1), jnp.float32),     # running max m
                pltpu.VMEM((tb, 1), jnp.float32),     # running sum l
                pltpu.VMEM((tb, 1), jnp.float32),     # running gathered logit
            ],
        ),
        compiler_params=pltpu.CompilerParams(
            dimension_semantics=("parallel", "arbitrary"),
            vmem_limit_bytes=48 * 1024 * 1024,        # <= 64 MiB physical on v7x
        ),
        cost_estimate=cost,
    )(x_p, w_p, winv_p, lab_p)

    # Mean over the real rows (padded rows are sliced off); trivial wrapper-side reduce.
    return jnp.mean(per_row[:B, 0])


def build_weights(key, feature_dim, num_classes, num_chunks):
    """Mirror the nn.ParameterList of per-'gpu' weight chunks: each chunk is
    torch.randn(feature_dim, classes_nums[i]); concatenated along the class axis."""
    per_chunk = math.ceil(num_classes / num_chunks)
    chunks = []
    cur = 0
    for i in range(num_chunks):
        n_i = min(per_chunk, num_classes - cur) if i < num_chunks - 1 else num_classes - cur
        key, sub = jax.random.split(key)
        chunks.append(jax.random.normal(sub, (feature_dim, n_i), dtype=jnp.float32))
        cur += n_i
    return jnp.concatenate(chunks, axis=1)  # (F, C)


if __name__ == "__main__":
    batch_size = 8
    feature_dim = 32
    num_classes = 64
    num_chunks = 2  # simulated "gpus" partitioning the class axis

    key = jax.random.PRNGKey(0)
    k_x, k_w, k_l = jax.random.split(key, 3)

    x = jax.random.normal(k_x, (batch_size, feature_dim), dtype=jnp.float32)
    label = jax.random.randint(k_l, (batch_size,), 0, num_classes, dtype=jnp.int32)
    w = build_weights(k_w, feature_dim, num_classes, num_chunks)

    loss = jax.block_until_ready(ndevice_top_loss(x, w, label))

    # Pure-JAX f32 reference (same math as the module). The kernel feeds bf16 to the
    # MXU (perf feedback), so use a correspondingly loose tolerance.
    fn = jnp.maximum(jnp.linalg.norm(x, axis=1, keepdims=True), 1e-12)
    wn = jnp.maximum(jnp.linalg.norm(w, axis=0, keepdims=True), 1e-12)
    cos = jnp.clip((x / fn) @ (w / wn), -1.0, 1.0)
    ref = jnp.mean(jax.scipy.special.logsumexp(cos, axis=1)
                   - cos[jnp.arange(batch_size), label])
    assert jnp.allclose(loss, ref, atol=2e-2, rtol=2e-2), (loss, ref)

    print("KERNEL_OK")
</pallas_src>

<mosaic_0001>
module attributes {stable_mosaic.version = 11 : i64} {
  func.func @_ndevice_top_kernel(%arg0: i32, %arg1: i32, %arg2: memref<8x32xf32, #tpu.memory_space<vmem>>, %arg3: memref<32x128xbf16, #tpu.memory_space<vmem>>, %arg4: memref<1x128xf32, #tpu.memory_space<vmem>>, %arg5: memref<8x1xi32, #tpu.memory_space<vmem>>, %arg6: memref<8x1xf32, #tpu.memory_space<vmem>>, %arg7: memref<8x32xbf16, #tpu.memory_space<vmem>>, %arg8: memref<8x1xf32, #tpu.memory_space<vmem>>, %arg9: memref<8x1xf32, #tpu.memory_space<vmem>>, %arg10: memref<8x1xf32, #tpu.memory_space<vmem>>) attributes {dimension_semantics = [#tpu.dimension_semantics<parallel>, #tpu.dimension_semantics<arbitrary>], iteration_bounds = array<i64: 1, 1>, scalar_prefetch = 0 : i64, scratch_operands = 4 : i64, tpu.core_type = #tpu.core_type<tc>, window_params = [{transform_indices = @transform_0, window_bounds = array<i64: 8, 32>}, {transform_indices = @transform_1, window_bounds = array<i64: 32, 128>}, {transform_indices = @transform_2, window_bounds = array<i64: 1, 128>}, {transform_indices = @transform_3, window_bounds = array<i64: 8, 1>}, {transform_indices = @transform_4, window_bounds = array<i64: 8, 1>}]} {
    %c0_i32 = arith.constant 0 : i32
    %0 = arith.cmpi eq, %arg1, %c0_i32 : i32
    %1 = arith.extui %0 : i1 to i32
    %c0_i32_0 = arith.constant 0 : i32
    %2 = arith.cmpi ne, %1, %c0_i32_0 : i32
    scf.if %2 {
      %c0_29 = arith.constant 0 : index
      %c0_30 = arith.constant 0 : index
      %50 = vector.load %arg2[%c0_29, %c0_30] : memref<8x32xf32, #tpu.memory_space<vmem>>, vector<8x32xf32>
      %51 = arith.mulf %50, %50 : vector<8x32xf32>
      %cst_31 = arith.constant dense<0.000000e+00> : vector<8xf32>
      %52 = vector.multi_reduction <add>, %51, %cst_31 [1] : vector<8x32xf32> to vector<8xf32>
      %53 = vector.shape_cast %52 : vector<8xf32> to vector<8x1xf32>
      %cst_32 = arith.constant 1.000000e-24 : f32
      %54 = vector.broadcast %cst_32 : f32 to vector<8x1xf32>
      %55 = arith.maximumf %53, %54 : vector<8x1xf32>
      %56 = math.rsqrt %55 : vector<8x1xf32>
      %57 = vector.broadcast %56 : vector<8x1xf32> to vector<8x32xf32>
      %58 = arith.mulf %50, %57 : vector<8x32xf32>
      %59 = arith.truncf %58 : vector<8x32xf32> to vector<8x32xbf16>
      %c0_33 = arith.constant 0 : index
      %c0_34 = arith.constant 0 : index
      %60 = vector.load %arg7[%c0_33, %c0_34] : memref<8x32xbf16, #tpu.memory_space<vmem>>, vector<8x32xbf16>
      tpu.vector_store %arg7[%c0_33, %c0_34], %59 {strides = array<i32>} : memref<8x32xbf16, #tpu.memory_space<vmem>>, vector<8x32xbf16>,
      %cst_35 = arith.constant -1.000000e+30 : f32
      %61 = vector.broadcast %cst_35 : f32 to vector<8x1xf32>
      %c0_36 = arith.constant 0 : index
      %c0_37 = arith.constant 0 : index
      %62 = vector.load %arg8[%c0_36, %c0_37] : memref<8x1xf32, #tpu.memory_space<vmem>>, vector<8x1xf32>
      tpu.vector_store %arg8[%c0_36, %c0_37], %61 {strides = array<i32>} : memref<8x1xf32, #tpu.memory_space<vmem>>, vector<8x1xf32>,
      %cst_38 = arith.constant 0.000000e+00 : f32
      %63 = vector.broadcast %cst_38 : f32 to vector<8x1xf32>
      %c0_39 = arith.constant 0 : index
      %c0_40 = arith.constant 0 : index
      %64 = vector.load %arg9[%c0_39, %c0_40] : memref<8x1xf32, #tpu.memory_space<vmem>>, vector<8x1xf32>
      tpu.vector_store %arg9[%c0_39, %c0_40], %63 {strides = array<i32>} : memref<8x1xf32, #tpu.memory_space<vmem>>, vector<8x1xf32>,
      %cst_41 = arith.constant 0.000000e+00 : f32
      %65 = vector.broadcast %cst_41 : f32 to vector<8x1xf32>
      %c0_42 = arith.constant 0 : index
      %c0_43 = arith.constant 0 : index
      %66 = vector.load %arg10[%c0_42, %c0_43] : memref<8x1xf32, #tpu.memory_space<vmem>>, vector<8x1xf32>
      tpu.vector_store %arg10[%c0_42, %c0_43], %65 {strides = array<i32>} : memref<8x1xf32, #tpu.memory_space<vmem>>, vector<8x1xf32>,
    } else {
    }
    %c0 = arith.constant 0 : index
    %c0_1 = arith.constant 0 : index
    %3 = vector.load %arg7[%c0, %c0_1] : memref<8x32xbf16, #tpu.memory_space<vmem>>, vector<8x32xbf16>
    %c0_2 = arith.constant 0 : index
    %c0_3 = arith.constant 0 : index
    %4 = vector.load %arg3[%c0_2, %c0_3] : memref<32x128xbf16, #tpu.memory_space<vmem>>, vector<32x128xbf16>
    %cst = arith.constant dense<0.000000e+00> : vector<8x128xf32>
    %5 = tpu.matmul %3, %4, %cst {dimension_numbers = #tpu.dot_dimension_numbers<[1], [0], [0], [1], [0, 0, 1, 1], [], []>} : vector<8x32xbf16>, vector<32x128xbf16>, vector<8x128xf32> -> vector<8x128xf32>
    %c0_4 = arith.constant 0 : index
    %c0_5 = arith.constant 0 : index
    %6 = vector.load %arg4[%c0_4, %c0_5] : memref<1x128xf32, #tpu.memory_space<vmem>>, vector<1x128xf32>
    %7 = vector.broadcast %6 : vector<1x128xf32> to vector<8x128xf32>
    %8 = arith.mulf %5, %7 : vector<8x128xf32>
    %cst_6 = arith.constant -1.000000e+00 : f32
    %cst_7 = arith.constant 1.000000e+00 : f32
    %9 = vector.broadcast %cst_6 : f32 to vector<8x128xf32>
    %10 = arith.maximumf %9, %8 : vector<8x128xf32>
    %11 = vector.broadcast %cst_7 : f32 to vector<8x128xf32>
    %12 = arith.minimumf %11, %10 : vector<8x128xf32>
    %c128_i32 = arith.constant 128 : i32
    %13 = arith.muli %arg1, %c128_i32 : i32
    %14 = tpu.iota {dimensions = array<i32: 1>} : vector<8x128xi32>
    %15 = vector.broadcast %13 : i32 to vector<8x128xi32>
    %16 = arith.addi %15, %14 : vector<8x128xi32>
    %c64_i32 = arith.constant 64 : i32
    %17 = vector.broadcast %c64_i32 : i32 to vector<8x128xi32>
    %18 = arith.cmpi slt, %16, %17 : vector<8x128xi32>
    %cst_8 = arith.constant -1.000000e+30 : f32
    %19 = vector.broadcast %cst_8 : f32 to vector<8x128xf32>
    %20 = arith.select %18, %12, %19 : vector<8x128xi1>, vector<8x128xf32>
    %c0_9 = arith.constant 0 : index
    %c0_10 = arith.constant 0 : index
    %21 = vector.load %arg8[%c0_9, %c0_10] : memref<8x1xf32, #tpu.memory_space<vmem>>, vector<8x1xf32>
    %cst_11 = arith.constant dense<0xFF800000> : vector<8xf32>
    %22 = vector.multi_reduction <maximumf>, %20, %cst_11 [1] : vector<8x128xf32> to vector<8xf32>
    %23 = vector.shape_cast %22 : vector<8xf32> to vector<8x1xf32>
    %24 = arith.maximumf %21, %23 : vector<8x1xf32>
    %25 = arith.subf %21, %24 : vector<8x1xf32>
    %26 = math.exp %25 : vector<8x1xf32>
    %c0_12 = arith.constant 0 : index
    %c0_13 = arith.constant 0 : index
    %27 = vector.load %arg9[%c0_12, %c0_13] : memref<8x1xf32, #tpu.memory_space<vmem>>, vector<8x1xf32>
    %28 = arith.mulf %26, %27 : vector<8x1xf32>
    %29 = vector.broadcast %24 : vector<8x1xf32> to vector<8x128xf32>
    %30 = arith.subf %20, %29 : vector<8x128xf32>
    %31 = math.exp %30 : vector<8x128xf32>
    %cst_14 = arith.constant dense<0.000000e+00> : vector<8xf32>
    %32 = vector.multi_reduction <add>, %31, %cst_14 [1] : vector<8x128xf32> to vector<8xf32>
    %33 = vector.shape_cast %32 : vector<8xf32> to vector<8x1xf32>
    %34 = arith.addf %28, %33 : vector<8x1xf32>
    %c0_15 = arith.constant 0 : index
    %c0_16 = arith.constant 0 : index
    %35 = vector.load %arg9[%c0_15, %c0_16] : memref<8x1xf32, #tpu.memory_space<vmem>>, vector<8x1xf32>
    tpu.vector_store %arg9[%c0_15, %c0_16], %34 {strides = array<i32>} : memref<8x1xf32, #tpu.memory_space<vmem>>, vector<8x1xf32>,
    %c0_17 = arith.constant 0 : index
    %c0_18 = arith.constant 0 : index
    %36 = vector.load %arg8[%c0_17, %c0_18] : memref<8x1xf32, #tpu.memory_space<vmem>>, vector<8x1xf32>
    tpu.vector_store %arg8[%c0_17, %c0_18], %24 {strides = array<i32>} : memref<8x1xf32, #tpu.memory_space<vmem>>, vector<8x1xf32>,
    %c0_19 = arith.constant 0 : index
    %c0_20 = arith.constant 0 : index
    %37 = vector.load %arg5[%c0_19, %c0_20] : memref<8x1xi32, #tpu.memory_space<vmem>>, vector<8x1xi32>
    %c0_21 = arith.constant 0 : index
    %c0_22 = arith.constant 0 : index
    %38 = vector.load %arg10[%c0_21, %c0_22] : memref<8x1xf32, #tpu.memory_space<vmem>>, vector<8x1xf32>
    %39 = vector.broadcast %37 : vector<8x1xi32> to vector<8x128xi32>
    %40 = arith.cmpi eq, %16, %39 : vector<8x128xi32>
    %cst_23 = arith.constant 0.000000e+00 : f32
    %41 = vector.broadcast %cst_23 : f32 to vector<8x128xf32>
    %42 = arith.select %40, %12, %41 : vector<8x128xi1>, vector<8x128xf32>
    %cst_24 = arith.constant dense<0.000000e+00> : vector<8xf32>
    %43 = vector.multi_reduction <add>, %42, %cst_24 [1] : vector<8x128xf32> to vector<8xf32>
    %44 = vector.shape_cast %43 : vector<8xf32> to vector<8x1xf32>
    %45 = arith.addf %38, %44 : vector<8x1xf32>
    %c0_25 = arith.constant 0 : index
    %c0_26 = arith.constant 0 : index
    %46 = vector.load %arg10[%c0_25, %c0_26] : memref<8x1xf32, #tpu.memory_space<vmem>>, vector<8x1xf32>
    tpu.vector_store %arg10[%c0_25, %c0_26], %45 {strides = array<i32>} : memref<8x1xf32, #tpu.memory_space<vmem>>, vector<8x1xf32>,
    %c0_i32_27 = arith.constant 0 : i32
    %47 = arith.cmpi eq, %arg1, %c0_i32_27 : i32
    %48 = arith.extui %47 : i1 to i32
    %c0_i32_28 = arith.constant 0 : i32
    %49 = arith.cmpi ne, %48, %c0_i32_28 : i32
    scf.if %49 {
      %c0_29 = arith.constant 0 : index
      %c0_30 = arith.constant 0 : index
      %50 = vector.load %arg8[%c0_29, %c0_30] : memref<8x1xf32, #tpu.memory_space<vmem>>, vector<8x1xf32>
      %c0_31 = arith.constant 0 : index
      %c0_32 = arith.constant 0 : index
      %51 = vector.load %arg9[%c0_31, %c0_32] : memref<8x1xf32, #tpu.memory_space<vmem>>, vector<8x1xf32>
      %52 = math.log %51 : vector<8x1xf32>
      %53 = arith.addf %50, %52 : vector<8x1xf32>
      %c0_33 = arith.constant 0 : index
      %c0_34 = arith.constant 0 : index
      %54 = vector.load %arg10[%c0_33, %c0_34] : memref<8x1xf32, #tpu.memory_space<vmem>>, vector<8x1xf32>
      %55 = arith.subf %53, %54 : vector<8x1xf32>
      %c0_35 = arith.constant 0 : index
      %c0_36 = arith.constant 0 : index
      %56 = vector.load %arg6[%c0_35, %c0_36] : memref<8x1xf32, #tpu.memory_space<vmem>>, vector<8x1xf32>
      tpu.vector_store %arg6[%c0_35, %c0_36], %55 {strides = array<i32>} : memref<8x1xf32, #tpu.memory_space<vmem>>, vector<8x1xf32>,
    } else {
    }
    return
  }
  func.func @transform_0(%arg0: i32, %arg1: i32) -> (i32, i32) {
    %c0_i32 = arith.constant 0 : i32
    %c0_i32_0 = arith.constant 0 : i32
    return %arg0, %c0_i32 : i32, i32
  }
  func.func @transform_1(%arg0: i32, %arg1: i32) -> (i32, i32) {
    %c0_i32 = arith.constant 0 : i32
    %c0_i32_0 = arith.constant 0 : i32
    return %c0_i32, %arg1 : i32, i32
  }
  func.func @transform_2(%arg0: i32, %arg1: i32) -> (i32, i32) {
    %c0_i32 = arith.constant 0 : i32
    %c0_i32_0 = arith.constant 0 : i32
    return %c0_i32, %arg1 : i32, i32
  }
  func.func @transform_3(%arg0: i32, %arg1: i32) -> (i32, i32) {
    %c0_i32 = arith.constant 0 : i32
    %c0_i32_0 = arith.constant 0 : i32
    return %arg0, %c0_i32 : i32, i32
  }
  func.func @transform_4(%arg0: i32, %arg1: i32) -> (i32, i32) {
    %c0_i32 = arith.constant 0 : i32
    %c0_i32_0 = arith.constant 0 : i32
    return %arg0, %c0_i32 : i32, i32
  }
}

</mosaic_0001>

<llo_original>
// kernel: tpu_custom_call.1
$region0: #{tpu_custom_call.1}
  #allocation0 [shape = 'u32[]', space=smem, size = 0x4, offset = 0x4, fixed_abs, tag = 'smem constant byte address 0x4 - core index']
  #allocation1 [shape = 'u32[144,128]{1,0:T(1,128)}', space=vmem, size = 0x12000, scoped, tag = 'internal scratch']
  #allocation2 [shape = 'bf16[8,32]{1,0:T(8,128)(2,1)}', space=vmem, size = 0x800, scoped, tag = 'scratch operand']
  #allocation3 [shape = 'f32[8,1]{1,0:T(8,128)}', space=vmem, size = 0x1000, scoped, tag = 'scratch operand']
  #allocation4 [shape = 'f32[8,1]{1,0:T(8,128)}', space=vmem, size = 0x1000, scoped, tag = 'scratch operand']
  #allocation5 [shape = 'f32[8,1]{1,0:T(8,128)}', space=vmem, size = 0x1000, scoped, tag = 'scratch operand']
  %s0 = inlined_call_operand.vmem [shape: f32[8,32], index: 0, kind: input, shape index: {}]
  %s1 = inlined_call_operand.hbm [shape: bf16[32,128], index: 1, kind: input, shape index: {}]
  %s2 = inlined_call_operand.vmem [shape: f32[1,128], index: 2, kind: input, shape index: {}]
  %s3 = inlined_call_operand.vmem [shape: s32[8,1], index: 3, kind: input, shape index: {}]
  %s4 = inlined_call_operand.vmem [shape: f32[8,1], index: 4, kind: output, shape index: {}]
  %s5 = sld [smem:[#allocation0]]
  $region38: #{tpu_custom_call.1} parent=0
    _
  %s7 = ssub.s32 1, %s5
  %s8 = scalar_select 0, %s7, %s5
  $region1: #{tpu_custom_call.1} parent=0
    #allocation6 [shape = 'u8[8192]{0}', space=vmem, size = 0x2000, scoped, tag = 'input window, operand 1, single buffered']
    #allocation7 [shape = 's32[1]{0}', space=sflag, size = 0x4, scoped, tag = 'scoped memory for tpu_custom_call.1']
    %9 = vsyncpa [#allocation7], 0
    // Predicated region
    $region2: #{tpu_custom_call.1} parent=1 // pred_check
      _
    $region3: #{tpu_custom_call.1} parent=1 // pred_check_branch
      %11 = sbr.rel (0) target = $region5
    $region4: #{tpu_custom_call.1} parent=1 // pred_region
      _
    $region5: #{tpu_custom_call.1} parent=1 // pred_fallthru
      _
    // Predicated region
    $region6: #{tpu_custom_call.1} parent=1 // pred_check
      _
    $region7: #{tpu_custom_call.1} parent=1 // pred_check_branch
      %13 = sbr.rel (0) target = $region9
    $region8: #{tpu_custom_call.1} parent=1 // pred_region
      %s15 = ssub.s32 256, 256
      %16 = vsyncadd [#allocation7], %s15
      %s17 = sshll.u32 [#allocation6], 4
      %s18 = int_to_ptr.vmem [resolvable:$true] %s17
      %23 = dma.hbm_to_vmem [thread:$0]  %s1, 256, %s18, [#allocation7], 64, 64, 4
    $region9: #{tpu_custom_call.1} parent=1 // pred_fallthru
      _
    // Predicated region
    $region10: #{tpu_custom_call.1} parent=1 // pred_check
      _
    $region11: #{tpu_custom_call.1} parent=1 // pred_check_branch
      %25 = sbr.rel (0) target = $region13
    $region12: #{tpu_custom_call.1} parent=1 // pred_region
      _
    $region13: #{tpu_custom_call.1} parent=1 // pred_fallthru
      _
    // Predicated region
    $region14: #{tpu_custom_call.1} parent=1 // pred_check
      _
    $region15: #{tpu_custom_call.1} parent=1 // pred_check_branch
      %27 = sbr.rel (0) target = $region17
    $region16: #{tpu_custom_call.1} parent=1 // pred_region
      _
    $region17: #{tpu_custom_call.1} parent=1 // pred_fallthru
      _
    // Predicated region
    $region18: #{tpu_custom_call.1} parent=1 // pred_check
      _
    $region19: #{tpu_custom_call.1} parent=1 // pred_check_branch
      %29 = sbr.rel (0) target = $region21
    $region20: #{tpu_custom_call.1} parent=1 // pred_region
      %30 = dma.done [#allocation7], 256
    $region21: #{tpu_custom_call.1} parent=1 // pred_fallthru
      _
    %p32 = scmp.eq.s32.totalorder 0, 0
    // Predicated region
    $region22: #{tpu_custom_call.1} parent=1 // pred_check
      %p33 = pneg %p32
    $region23: #{tpu_custom_call.1} parent=1 // pred_check_branch
      %35 = sbr.rel (%p33) target = $region25
    $region24: #{tpu_custom_call.1} parent=1 // pred_region
      %v36 = vld [vmem:[%s0] sm:$0xff]
      %v37 = vmul.f32 %v36, %v36
      %vm38 = vcmask 261120
      %v39 = vsel %vm38, %v37, 0.0
      %40 = vadd.xlane.f32.xlu0 %v39
      %v41 = vpop.xlane.xlu0 %40
      %v42 = vmax.f32 %v41, 1e-24
      %v43 = vrsqrt.pop %v42
      %v44 = vmul.f32 %v36, %v43
      %v45 = vpack.c.bf16 %v44, %v44
      %vm46 = vcmask 257024
      %47 = vst.msk [vmem:[#allocation2] sm:$0xf] %vm46, %v45
      %vm48 = vcmask 7168
      %49 = vst.msk [vmem:[#allocation3] sm:$0xff] %vm48, -1e+30
      %50 = vst.msk [vmem:[#allocation4] sm:$0xff] %vm48, 0.0
      %51 = vst.msk [vmem:[#allocation5] sm:$0xff] %vm48, 0.0
    $region25: #{tpu_custom_call.1} parent=1 // pred_fallthru
      _
    %v52 = vld [vmem:[#allocation2] sm:$0xf]
    %v53 = vld [vmem:[#allocation6] sm:$0xf]
    %v54 = vld [vmem:[#allocation6 + $0x4] sm:$0xf]
    %v55 = vld [vmem:[#allocation6 + $0x8] sm:$0xf]
    %v56 = vld [vmem:[#allocation6 + $0xc] sm:$0xf]
    %v61 = vunpack.c.l.b16 %v53
    %v62 = vunpack.c.l.b16 %v54
    %v63 = vunpack.c.l.b16 %v55
    %v64 = vunpack.c.l.b16 %v56
    %v65 = vpack.c.b16 %v62, %v61
    %v66 = vpack.c.b16 %v64, %v63
    %vm69 = vcmask 261120
    %v71 = vsel %vm69, %v52, 0
    %73 = vmatprep.subr.bf16.mxu0 0
    %74 = vmatpush1.bf16.msra.mxu0 %v65
    %75 = vmatprep.subr.bf16.mxu0 0
    %76 = vmatpush1.bf16.msra.mxu0 %v66
    %77 = vmatprep.subr.bf16.mxu0 0
    %78 = vmatpush1.bf16.msra.mxu0 0
    %79 = vmatprep.subr.bf16.mxu0 0
    %80 = vmatpush1.bf16.msra.mxu0 0
    %81 = vmatprep.subr.bf16.mxu0 0
    %82 = vmatpush1.bf16.msra.mxu0 0
    %83 = vmatprep.subr.bf16.mxu0 0
    %84 = vmatpush1.bf16.msra.mxu0 0
    %85 = vmatprep.subr.bf16.mxu0 0
    %86 = vmatpush1.bf16.msra.mxu0 0
    %87 = vmatprep.subr.bf16.mxu0 0
    %88 = vmatpush1.bf16.msra.mxu0 0
    %89 = vmatprep.subr.bf16.mxu0 0
    %90 = vmatpush1.bf16.msra.mxu0 0
    %91 = vmatprep.subr.bf16.mxu0 0
    %92 = vmatpush1.bf16.msra.mxu0 0
    %93 = vmatprep.subr.bf16.mxu0 0
    %94 = vmatpush1.bf16.msra.mxu0 0
    %95 = vmatprep.subr.bf16.mxu0 0
    %96 = vmatpush1.bf16.msra.mxu0 0
    %97 = vmatprep.subr.bf16.mxu0 0
    %98 = vmatpush1.bf16.msra.mxu0 0
    %99 = vmatprep.subr.bf16.mxu0 0
    %100 = vmatpush1.bf16.msra.mxu0 0
    %101 = vmatprep.subr.bf16.mxu0 0
    %102 = vmatpush1.bf16.msra.mxu0 0
    %103 = vmatprep.subr.bf16.mxu0 0
    %104 = vmatpush1.bf16.msra.mxu0 0
    %105 = vmatprep.mubr.bf16.mxu0 0
    %106 = vmatmul.mubr.bf16.gmra.mrb[0].mxu0 %v71
    %v107 = vpop.f32.mrb[0].mxu0
    %v108 = vadd.f32 0.0, %v107
    %v109 = vpop.f32.mrb[0].mxu0
    %v110 = vpop.f32.mrb[0].mxu0
    %v111 = vpop.f32.mrb[0].mxu0
    %112 = vdwg.mxu0
    %v113 = vld [vmem:[%s2] sm:$0x1]
    %v115 = vlaneseq
    %v116 = vshrl.u32 %v115, 7
    %v117 = vsub.s32 0, %v116
    %v118 = vrot.slane %v113, %v117
    %v120 = vmul.f32 %v108, %v118
    %v121 = vmax.f32 %v120, -1.0
    %v122 = vmin.f32 %v121, 1.0
    %s123 = smul.u32 0, 128
    %v124 = vlaneseq
    %v125 = vand.u32 %v124, 127
    %v126 = vstv %s123
    %v127 = vadd.s32 %v126, %v125
    %vm128 = vcmp.lt.s32.totalorder %v127, 64
    %v129 = vsel %vm128, %v122, -1e+30
    %v130 = vld [vmem:[#allocation3] sm:$0xff]
    %131 = vmax.xlane.f32.xlu0 %v129
    %v132 = vpop.xlane.xlu0 %131
    %v133 = vmax.f32 %v130, %v132
    %v134 = vsub.f32 %v130, %v133
    %v135 = vmul.f32 %v134, 1.442695
    %v136 = vpow.pop %v135
    %v137 = vld [vmem:[#allocation4] sm:$0xff]
    %v138 = vmul.f32 %v136, %v137
    %140 = vset.pattern.permute.xlu0 0
    %141 = vperm.xlu0 %140, %v133
    %v142 = vpop.permute.xlu0 %141
    %v144 = vsub.f32 %v129, %v142
    %v145 = vmul.f32 %v144, 1.442695
    %v146 = vpow.pop %v145
    %147 = vadd.xlane.f32.xlu0 %v146
    %v148 = vpop.xlane.xlu0 %147
    %v149 = vadd.f32 %v138, %v148
    %vm150 = vcmask 7168
    %151 = vst.msk [vmem:[#allocation4] sm:$0xff] %vm150, %v149
    %152 = vst.msk [vmem:[#allocation3] sm:$0xff] %vm150, %v133
    %v153 = vld [vmem:[%s3] sm:$0xff]
    %v154 = vld [vmem:[#allocation5] sm:$0xff]
    %155 = vset.pattern.permute.xlu0 0
    %156 = vperm.xlu0 %155, %v153
    %v157 = vpop.permute.xlu0 %156
    %vm158 = vcmp.eq.s32.totalorder %v127, %v157
    %v159 = vsel %vm158, %v122, 0.0
    %160 = vadd.xlane.f32.xlu0 %v159
    %v161 = vpop.xlane.xlu0 %160
    %v162 = vadd.f32 %v154, %v161
    %163 = vst.msk [vmem:[#allocation5] sm:$0xff] %vm150, %v162
    // Predicated region
    $region26: #{tpu_custom_call.1} parent=1 // pred_check
      %p164 = pneg %p32
    $region27: #{tpu_custom_call.1} parent=1 // pred_check_branch
      %166 = sbr.rel (%p164) target = $region29
    $region28: #{tpu_custom_call.1} parent=1 // pred_region
      %v167 = vld [vmem:[#allocation3] sm:$0xff]
      %v168 = vld [vmem:[#allocation4] sm:$0xff]
      %v169 = vlog2.pop %v168
      %v170 = vmul.f32 %v169, 0.6931472
      %v171 = vadd.f32 %v167, %v170
      %v172 = vld [vmem:[#allocation5] sm:$0xff]
      %v173 = vsub.f32 %v171, %v172
      %174 = vst.msk [vmem:[%s4] sm:$0xff] %vm150, %v173
    $region29: #{tpu_custom_call.1} parent=1 // pred_fallthru
      _
    // Predicated region
    $region30: #{tpu_custom_call.1} parent=1 // pred_check
      _
    $region31: #{tpu_custom_call.1} parent=1 // pred_check_branch
      %176 = sbr.rel (0) target = $region33
    $region32: #{tpu_custom_call.1} parent=1 // pred_region
      _
    $region33: #{tpu_custom_call.1} parent=1 // pred_fallthru
      _
    // Predicated region
    $region34: #{tpu_custom_call.1} parent=1 // pred_check
      _
    $region35: #{tpu_custom_call.1} parent=1 // pred_check_branch
      %178 = sbr.rel (0) target = $region37
    $region36: #{tpu_custom_call.1} parent=1 // pred_region
      _
    $region37: #{tpu_custom_call.1} parent=1 // pred_fallthru
      _
    %179 = vsyncpa [#allocation7], 1

</llo_original>
